<compile_context>
chip_gen: v5e
topology: v5e:2x2
jax: 0.10.0
libtpu: 0.0.40
codegen_flags: <defaults>
</compile_context>

<pallas_src>
import functools
import math

import jax
import jax.numpy as jnp
from jax.experimental import pallas as pl
from jax.experimental.pallas import tpu as pltpu


# ----------------------------------------------------------------------------
# Kernel 1: per-sample Gaussian log_prob, tiled over (N samples, D data points)
# ----------------------------------------------------------------------------
def _log_prob_kernel(theta_ref, x_ref, y_ref, sigma_ref, lp_ref, acc_ref,
                     *, log_norm_const):
    k = pl.program_id(1)

    @pl.when(k == 0)
    def _():
        acc_ref[...] = jnp.zeros_like(acc_ref)

    theta = theta_ref[...]                 # (tn, 1)
    x = x_ref[...]                         # (1, td)
    y = y_ref[...]                         # (1, td)
    sigma = sigma_ref[...]                 # (1, td)

    # Sample-independent (1, td) prework — EUP (recip/log) + XLU (reduce)
    # slots, negligible vs. the (tn, td) hot path below.
    inv_sigma = 1.0 / sigma
    xs = x * inv_sigma
    ys = y * inv_sigma
    log_sig_sum = jnp.sum(jnp.log(sigma), axis=-1, keepdims=True)      # (1, 1)

    # Hot path: single fused (tn, td) temporary, lane reduction per sample.
    r = theta * xs - ys                                                # (tn, td)
    quad = jnp.sum(r * r, axis=-1, keepdims=True)                      # (tn, 1)

    acc_ref[...] += -0.5 * quad - log_sig_sum                          # (tn, 1)

    @pl.when(k == pl.num_programs(1) - 1)
    def _():
        lp_ref[...] = acc_ref[...] + log_norm_const                    # (tn, 1)


# ----------------------------------------------------------------------------
# Kernel 2: masked, max-stabilized logsumexp over the N per-sample log_probs
# ----------------------------------------------------------------------------
def _logsumexp_kernel(lp_ref, out_ref, *, n_valid, log_inv_n):
    lp = lp_ref[...]                                                   # (Npad, 1)
    rows = jax.lax.broadcasted_iota(jnp.int32, lp.shape, 0)
    lp = jnp.where(rows < n_valid, lp, jnp.float32(-1e30))
    m = jnp.max(lp, axis=0, keepdims=True)                             # (1, 1)
    s = jnp.sum(jnp.exp(lp - m), axis=0, keepdims=True)                # (1, 1)
    out_ref[...] = log_inv_n + m + jnp.log(s)                          # (1, 1)


# ----------------------------------------------------------------------------
# Wrapper
# ----------------------------------------------------------------------------
def _round_up(v, m):
    return ((v + m - 1) // m) * m


def log_marginal_likelihood(theta_samples, x_data, y_data, sigma,
                            *, tn=256, td=2048):
    """theta_samples: (N, 1); x_data / y_data / sigma: (1, D). Returns scalar f32."""
    theta = jnp.asarray(theta_samples, jnp.float32).reshape(-1, 1)
    x = jnp.asarray(x_data, jnp.float32).reshape(1, -1)
    y = jnp.asarray(y_data, jnp.float32).reshape(1, -1)
    s = jnp.asarray(sigma, jnp.float32).reshape(1, -1)

    n = theta.shape[0]
    d = x.shape[-1]

    # --- pad D with (x=0, y=0, sigma=1): exactly zero contribution ---
    td = min(td, _round_up(d, 128))
    d_pad = _round_up(d, td)
    if d_pad != d:
        pad = d_pad - d
        x = jnp.pad(x, ((0, 0), (0, pad)))
        y = jnp.pad(y, ((0, 0), (0, pad)))
        s = jnp.pad(s, ((0, 0), (0, pad)), constant_values=1.0)

    # --- pad N; padded rows are masked out in the finalize kernel ---
    if n >= tn:
        n_pad = _round_up(n, tn)
    else:
        tn = _round_up(n, 8)
        n_pad = tn
    if n_pad != n:
        theta = jnp.pad(theta, ((0, n_pad - n), (0, 0)))

    grid = (n_pad // tn, d_pad // td)

    # Sample-independent constant, folded at trace time (uses the TRUE D).
    log_norm_const = float(-0.5 * d * math.log(2.0 * math.pi))

    log_probs = pl.pallas_call(
        functools.partial(_log_prob_kernel, log_norm_const=log_norm_const),
        out_shape=jax.ShapeDtypeStruct((n_pad, 1), jnp.float32),
        grid_spec=pltpu.PrefetchScalarGridSpec(
            num_scalar_prefetch=0,
            grid=grid,
            in_specs=[
                pl.BlockSpec((tn, 1), lambda i, k: (i, 0)),   # theta samples
                pl.BlockSpec((1, td), lambda i, k: (0, k)),   # x
                pl.BlockSpec((1, td), lambda i, k: (0, k)),   # y
                pl.BlockSpec((1, td), lambda i, k: (0, k)),   # sigma
            ],
            out_specs=pl.BlockSpec((tn, 1), lambda i, k: (i, 0)),
            scratch_shapes=[pltpu.VMEM((tn, 1), jnp.float32)],
        ),
        compiler_params=pltpu.CompilerParams(
            # N tiles shard across v7x megacore; D is the reduction axis.
            dimension_semantics=("parallel", "arbitrary"),
            vmem_limit_bytes=32 * 1024 * 1024,
        ),
    )(theta, x, y, s)

    out = pl.pallas_call(
        functools.partial(_logsumexp_kernel, n_valid=n,
                          log_inv_n=float(-math.log(n))),
        out_shape=jax.ShapeDtypeStruct((1, 1), jnp.float32),
        in_specs=[pl.BlockSpec(memory_space=pltpu.MemorySpace.VMEM)],
        out_specs=pl.BlockSpec(memory_space=pltpu.MemorySpace.VMEM),
    )(log_probs)
    return out[0, 0]


# ----------------------------------------------------------------------------
# Pure-JAX reference
# ----------------------------------------------------------------------------
def _reference(theta_samples, x_data, y_data, sigma):
    n = theta_samples.shape[0]
    d = x_data.shape[-1]
    preds = theta_samples * x_data
    res = preds - y_data
    quad = jnp.sum(res * res / (sigma * sigma), axis=-1)
    log_norm = -0.5 * d * jnp.log(2.0 * jnp.pi) - jnp.sum(jnp.log(sigma))
    log_probs = log_norm - 0.5 * quad
    return jnp.log(1.0 / n) + jax.scipy.special.logsumexp(log_probs)


if __name__ == "__main__":
    # Small shapes that still exercise the (N_tiles, D_tiles) grid and padding.
    num_material_parameter_samples = 100     # N  (padded to 128; tn=64 -> 2 tiles)
    num_data_points = 300                    # D  (padded to 384; td=128 -> 3 tiles)

    key = jax.random.PRNGKey(0)
    k_theta, k_x, k_noise = jax.random.split(key, 3)

    # Prior samples of the material parameter, shape (N, 1), as in
    # prior_material_parameters.sample((N, 1)).
    true_theta = 2.0
    theta_samples = (true_theta
                     + 0.2 * jax.random.normal(
                         k_theta, (num_material_parameter_samples, 1),
                         dtype=jnp.float32))

    # Synthetic calibration data for the linear forward model.
    x_data = jax.random.uniform(k_x, (1, num_data_points), dtype=jnp.float32,
                                minval=0.0, maxval=1.0)
    noise_std = 0.1
    y_data = (true_theta * x_data
              + noise_std * jax.random.normal(k_noise, (1, num_data_points),
                                              dtype=jnp.float32))
    sigma = jnp.full((1, num_data_points), noise_std, dtype=jnp.float32)

    result = log_marginal_likelihood(theta_samples, x_data, y_data, sigma,
                                     tn=64, td=128)
    jax.block_until_ready(result)

    ref = _reference(theta_samples, x_data, y_data, sigma)
    # f32 kernel vs f32 reference with different reduction orders over D.
    assert jnp.allclose(result, ref, rtol=1e-4, atol=1e-2), (result, ref)

    print("KERNEL_OK")
</pallas_src>

<mosaic_0001>
module attributes {stable_mosaic.version = 11 : i64} {
  func.func @_log_prob_kernel(%arg0: i32, %arg1: i32, %arg2: memref<64x1xf32, #tpu.memory_space<vmem>>, %arg3: memref<1x128xf32, #tpu.memory_space<vmem>>, %arg4: memref<1x128xf32, #tpu.memory_space<vmem>>, %arg5: memref<1x128xf32, #tpu.memory_space<vmem>>, %arg6: memref<64x1xf32, #tpu.memory_space<vmem>>, %arg7: memref<64x1xf32, #tpu.memory_space<vmem>>) attributes {dimension_semantics = [#tpu.dimension_semantics<parallel>, #tpu.dimension_semantics<arbitrary>], iteration_bounds = array<i64: 2, 3>, scalar_prefetch = 0 : i64, scratch_operands = 1 : i64, tpu.core_type = #tpu.core_type<tc>, window_params = [{transform_indices = @transform_0, window_bounds = array<i64: 64, 1>}, {transform_indices = @transform_1, window_bounds = array<i64: 1, 128>}, {transform_indices = @transform_2, window_bounds = array<i64: 1, 128>}, {transform_indices = @transform_3, window_bounds = array<i64: 1, 128>}, {transform_indices = @transform_4, window_bounds = array<i64: 64, 1>}]} {
    %c0_i32 = arith.constant 0 : i32
    %0 = arith.cmpi eq, %arg1, %c0_i32 : i32
    %1 = arith.extui %0 : i1 to i32
    %c0_i32_0 = arith.constant 0 : i32
    %2 = arith.cmpi ne, %1, %c0_i32_0 : i32
    scf.if %2 {
      %cst_16 = arith.constant 0.000000e+00 : f32
      %32 = vector.broadcast %cst_16 : f32 to vector<64x1xf32>
      %c0_17 = arith.constant 0 : index
      %c0_18 = arith.constant 0 : index
      %33 = vector.load %arg7[%c0_17, %c0_18] : memref<64x1xf32, #tpu.memory_space<vmem>>, vector<64x1xf32>
      tpu.vector_store %arg7[%c0_17, %c0_18], %32 {strides = array<i32>} : memref<64x1xf32, #tpu.memory_space<vmem>>, vector<64x1xf32>,
    } else {
    }
    %c0 = arith.constant 0 : index
    %c0_1 = arith.constant 0 : index
    %3 = vector.load %arg2[%c0, %c0_1] : memref<64x1xf32, #tpu.memory_space<vmem>>, vector<64x1xf32>
    %c0_2 = arith.constant 0 : index
    %c0_3 = arith.constant 0 : index
    %4 = vector.load %arg3[%c0_2, %c0_3] : memref<1x128xf32, #tpu.memory_space<vmem>>, vector<1x128xf32>
    %c0_4 = arith.constant 0 : index
    %c0_5 = arith.constant 0 : index
    %5 = vector.load %arg4[%c0_4, %c0_5] : memref<1x128xf32, #tpu.memory_space<vmem>>, vector<1x128xf32>
    %c0_6 = arith.constant 0 : index
    %c0_7 = arith.constant 0 : index
    %6 = vector.load %arg5[%c0_6, %c0_7] : memref<1x128xf32, #tpu.memory_space<vmem>>, vector<1x128xf32>
    %cst = arith.constant 1.000000e+00 : f32
    %7 = vector.broadcast %cst : f32 to vector<1x128xf32>
    %8 = arith.divf %7, %6 : vector<1x128xf32>
    %9 = arith.mulf %4, %8 : vector<1x128xf32>
    %10 = arith.mulf %5, %8 : vector<1x128xf32>
    %11 = math.log %6 : vector<1x128xf32>
    %cst_8 = arith.constant dense<0.000000e+00> : vector<1xf32>
    %12 = vector.multi_reduction <add>, %11, %cst_8 [1] : vector<1x128xf32> to vector<1xf32>
    %13 = vector.shape_cast %12 : vector<1xf32> to vector<1x1xf32>
    %14 = vector.broadcast %3 : vector<64x1xf32> to vector<64x128xf32>
    %15 = vector.broadcast %9 : vector<1x128xf32> to vector<64x128xf32>
    %16 = arith.mulf %14, %15 : vector<64x128xf32>
    %17 = vector.broadcast %10 : vector<1x128xf32> to vector<64x128xf32>
    %18 = arith.subf %16, %17 : vector<64x128xf32>
    %19 = arith.mulf %18, %18 : vector<64x128xf32>
    %cst_9 = arith.constant dense<0.000000e+00> : vector<64xf32>
    %20 = vector.multi_reduction <add>, %19, %cst_9 [1] : vector<64x128xf32> to vector<64xf32>
    %21 = vector.shape_cast %20 : vector<64xf32> to vector<64x1xf32>
    %c0_10 = arith.constant 0 : index
    %c0_11 = arith.constant 0 : index
    %22 = vector.load %arg7[%c0_10, %c0_11] : memref<64x1xf32, #tpu.memory_space<vmem>>, vector<64x1xf32>
    %cst_12 = arith.constant -5.000000e-01 : f32
    %23 = vector.broadcast %cst_12 : f32 to vector<64x1xf32>
    %24 = arith.mulf %23, %21 : vector<64x1xf32>
    %25 = vector.broadcast %13 : vector<1x1xf32> to vector<64x1xf32>
    %26 = arith.subf %24, %25 : vector<64x1xf32>
    %27 = arith.addf %22, %26 : vector<64x1xf32>
    %c0_13 = arith.constant 0 : index
    %c0_14 = arith.constant 0 : index
    %28 = vector.load %arg7[%c0_13, %c0_14] : memref<64x1xf32, #tpu.memory_space<vmem>>, vector<64x1xf32>
    tpu.vector_store %arg7[%c0_13, %c0_14], %27 {strides = array<i32>} : memref<64x1xf32, #tpu.memory_space<vmem>>, vector<64x1xf32>,
    %c2_i32 = arith.constant 2 : i32
    %29 = arith.cmpi eq, %arg1, %c2_i32 : i32
    %30 = arith.extui %29 : i1 to i32
    %c0_i32_15 = arith.constant 0 : i32
    %31 = arith.cmpi ne, %30, %c0_i32_15 : i32
    scf.if %31 {
      %c0_16 = arith.constant 0 : index
      %c0_17 = arith.constant 0 : index
      %32 = vector.load %arg7[%c0_16, %c0_17] : memref<64x1xf32, #tpu.memory_space<vmem>>, vector<64x1xf32>
      %cst_18 = arith.constant -275.681549 : f32
      %33 = vector.broadcast %cst_18 : f32 to vector<64x1xf32>
      %34 = arith.addf %32, %33 : vector<64x1xf32>
      %c0_19 = arith.constant 0 : index
      %c0_20 = arith.constant 0 : index
      %35 = vector.load %arg6[%c0_19, %c0_20] : memref<64x1xf32, #tpu.memory_space<vmem>>, vector<64x1xf32>
      tpu.vector_store %arg6[%c0_19, %c0_20], %34 {strides = array<i32>} : memref<64x1xf32, #tpu.memory_space<vmem>>, vector<64x1xf32>,
    } else {
    }
    return
  }
  func.func @transform_0(%arg0: i32, %arg1: i32) -> (i32, i32) {
    %c0_i32 = arith.constant 0 : i32
    %c0_i32_0 = arith.constant 0 : i32
    return %arg0, %c0_i32 : i32, i32
  }
  func.func @transform_1(%arg0: i32, %arg1: i32) -> (i32, i32) {
    %c0_i32 = arith.constant 0 : i32
    %c0_i32_0 = arith.constant 0 : i32
    return %c0_i32, %arg1 : i32, i32
  }
  func.func @transform_2(%arg0: i32, %arg1: i32) -> (i32, i32) {
    %c0_i32 = arith.constant 0 : i32
    %c0_i32_0 = arith.constant 0 : i32
    return %c0_i32, %arg1 : i32, i32
  }
  func.func @transform_3(%arg0: i32, %arg1: i32) -> (i32, i32) {
    %c0_i32 = arith.constant 0 : i32
    %c0_i32_0 = arith.constant 0 : i32
    return %c0_i32, %arg1 : i32, i32
  }
  func.func @transform_4(%arg0: i32, %arg1: i32) -> (i32, i32) {
    %c0_i32 = arith.constant 0 : i32
    %c0_i32_0 = arith.constant 0 : i32
    return %arg0, %c0_i32 : i32, i32
  }
}

</mosaic_0001>

<llo_original>
// kernel: tpu_custom_call.1
$region0: #{tpu_custom_call.1}
  #allocation0 [shape = 'u32[]', space=smem, size = 0x4, offset = 0x4, fixed_abs, tag = 'smem constant byte address 0x4 - core index']
  #allocation1 [shape = 'u32[72,128]{1,0:T(1,128)}', space=vmem, size = 0x9000, scoped, tag = 'internal scratch']
  #allocation2 [shape = 'f32[64,1]{1,0:T(8,128)}', space=vmem, size = 0x8000, scoped, tag = 'scratch operand']
  %s0 = inlined_call_operand.vmem [shape: f32[128,1], index: 0, kind: input, shape index: {}]
  %s1 = inlined_call_operand.vmem [shape: f32[1,384], index: 1, kind: input, shape index: {}]
  %s2 = inlined_call_operand.vmem [shape: f32[1,384], index: 2, kind: input, shape index: {}]
  %s3 = inlined_call_operand.vmem [shape: f32[1,384], index: 3, kind: input, shape index: {}]
  %s4 = inlined_call_operand.vmem [shape: f32[128,1], index: 4, kind: output, shape index: {}]
  %s5 = sld [smem:[#allocation0]]
  $region57: #{tpu_custom_call.1} parent=0
    _
  %s7 = ssub.s32 1, %s5
  %s8 = scalar_select 0, %s7, %s5
  loop: start=0, step=1, limit=8
  $region2: #{tpu_custom_call.1} parent=0 // loop_pre_header
    _
  $region3: #{tpu_custom_call.1} parent=0 // loop_header
    %s10 = sphi 0, %s14
    %p11 = scmp.ge.s32.totalorder %s10, 8
    %s17 = sphi 0, %s29
    %s18 = sphi 0, %s25
    %s19 = sphi 0, %s17
    %s20 = sphi 0, %s18
    %s21 = sphi 0, %s19
    %s22 = sphi 0, %s20
    %s32 = sphi 0, %s34
    %s35 = sphi 0, %s32
    %s36 = sphi 0, %s35
    %s52 = sphi 0, %s36
    %s58 = sphi 0, %s60
    %s61 = sphi 0, %s58
    %s62 = sphi 0, %s61
    %s78 = sphi 0, %s62
    %s84 = sphi 0, %s86
    %s87 = sphi 0, %s84
    %s88 = sphi 0, %s87
    %s104 = sphi 0, %s88
    %s110 = sphi 0, %s112
    %s113 = sphi 0, %s110
    %s114 = sphi 0, %s113
    %s130 = sphi 0, %s114
    %s136 = sphi 0, %s138
    %s139 = sphi 0, %s136
    %s140 = sphi 0, %s139
    %s156 = sphi 0, %s140
  $region4: #{tpu_custom_call.1} parent=0 // loop_header_branch
    %13 = sbr.rel (%p11) target = $region8
  $region5: #{tpu_custom_call.1} parent=0 // loop_body
    %s15 = ssub.s32 %s10, 1
    %s16 = ssub.s32 %s10, 2
    %s23 = sadd.s32 1, %s18
    %p24 = scmp.ge.s32.totalorder %s23, 3
    %s25 = scalar_select %p24, 0, %s23
    %s26 = sadd.s32 1, %s17
    %s27 = scalar_select %p24, %s26, %s17
    %p28 = scmp.ge.s32.totalorder %s27, 2
    %s29 = scalar_select %p28, 0, %s27
    %s30 = ssub.s32 %s17, %s29
    %p31 = scmp.eq.s32.totalorder %s30, 0
    %s33 = sadd.s32 %s32, 1
    %s34 = scalar_select %p31, %s32, %s33
    %p37 = pneg %p31
    %p38 = scmp.eq.s32.totalorder %s10, 5
    %p39 = por %p37, %p38
    %p40 = scmp.ne.s32.totalorder %s32, %s35
    %p41 = scmp.eq.s32.totalorder %s10, 0
    %p42 = por %p40, %p41
    %p43 = scmp.ne.s32.totalorder %s32, %s35
    %p44 = scmp.eq.s32.totalorder %s15, 5
    %p45 = por %p43, %p44
    %p46 = scmp.ne.s32.totalorder %s35, %s36
    %p47 = scmp.eq.s32.totalorder %s15, 0
    %p48 = por %p46, %p47
    %p49 = scmp.ne.s32.totalorder %s35, %s36
    %p50 = scmp.eq.s32.totalorder %s16, 5
    %p51 = por %p49, %p50
    %p53 = scmp.ne.s32.totalorder %s36, %s52
    %p54 = scmp.eq.s32.totalorder %s16, 0
    %p55 = por %p53, %p54
    %s56 = ssub.s32 %s18, %s25
    %p57 = scmp.eq.s32.totalorder %s56, 0
    %s59 = sadd.s32 %s58, 1
    %s60 = scalar_select %p57, %s58, %s59
    %p63 = pneg %p57
    %p64 = scmp.eq.s32.totalorder %s10, 5
    %p65 = por %p63, %p64
    %p66 = scmp.ne.s32.totalorder %s58, %s61
    %p67 = scmp.eq.s32.totalorder %s10, 0
    %p68 = por %p66, %p67
    %p69 = scmp.ne.s32.totalorder %s58, %s61
    %p70 = scmp.eq.s32.totalorder %s15, 5
    %p71 = por %p69, %p70
    %p72 = scmp.ne.s32.totalorder %s61, %s62
    %p73 = scmp.eq.s32.totalorder %s15, 0
    %p74 = por %p72, %p73
    %p75 = scmp.ne.s32.totalorder %s61, %s62
    %p76 = scmp.eq.s32.totalorder %s16, 5
    %p77 = por %p75, %p76
    %p79 = scmp.ne.s32.totalorder %s62, %s78
    %p80 = scmp.eq.s32.totalorder %s16, 0
    %p81 = por %p79, %p80
    %s82 = ssub.s32 %s18, %s25
    %p83 = scmp.eq.s32.totalorder %s82, 0
    %s85 = sadd.s32 %s84, 1
    %s86 = scalar_select %p83, %s84, %s85
    %p89 = pneg %p83
    %p90 = scmp.eq.s32.totalorder %s10, 5
    %p91 = por %p89, %p90
    %p92 = scmp.ne.s32.totalorder %s84, %s87
    %p93 = scmp.eq.s32.totalorder %s10, 0
    %p94 = por %p92, %p93
    %p95 = scmp.ne.s32.totalorder %s84, %s87
    %p96 = scmp.eq.s32.totalorder %s15, 5
    %p97 = por %p95, %p96
    %p98 = scmp.ne.s32.totalorder %s87, %s88
    %p99 = scmp.eq.s32.totalorder %s15, 0
    %p100 = por %p98, %p99
    %p101 = scmp.ne.s32.totalorder %s87, %s88
    %p102 = scmp.eq.s32.totalorder %s16, 5
    %p103 = por %p101, %p102
    %p105 = scmp.ne.s32.totalorder %s88, %s104
    %p106 = scmp.eq.s32.totalorder %s16, 0
    %p107 = por %p105, %p106
    %s108 = ssub.s32 %s18, %s25
    %p109 = scmp.eq.s32.totalorder %s108, 0
    %s111 = sadd.s32 %s110, 1
    %s112 = scalar_select %p109, %s110, %s111
    %p115 = pneg %p109
    %p116 = scmp.eq.s32.totalorder %s10, 5
    %p117 = por %p115, %p116
    %p118 = scmp.ne.s32.totalorder %s110, %s113
    %p119 = scmp.eq.s32.totalorder %s10, 0
    %p120 = por %p118, %p119
    %p121 = scmp.ne.s32.totalorder %s110, %s113
    %p122 = scmp.eq.s32.totalorder %s15, 5
    %p123 = por %p121, %p122
    %p124 = scmp.ne.s32.totalorder %s113, %s114
    %p125 = scmp.eq.s32.totalorder %s15, 0
    %p126 = por %p124, %p125
    %p127 = scmp.ne.s32.totalorder %s113, %s114
    %p128 = scmp.eq.s32.totalorder %s16, 5
    %p129 = por %p127, %p128
    %p131 = scmp.ne.s32.totalorder %s114, %s130
    %p132 = scmp.eq.s32.totalorder %s16, 0
    %p133 = por %p131, %p132
    %s134 = ssub.s32 %s17, %s29
    %p135 = scmp.eq.s32.totalorder %s134, 0
    %s137 = sadd.s32 %s136, 1
    %s138 = scalar_select %p135, %s136, %s137
    %p141 = pneg %p135
    %p142 = scmp.eq.s32.totalorder %s10, 5
    %p143 = por %p141, %p142
    %p144 = scmp.ne.s32.totalorder %s136, %s139
    %p145 = scmp.eq.s32.totalorder %s10, 0
    %p146 = por %p144, %p145
    %p147 = scmp.ne.s32.totalorder %s136, %s139
    %p148 = scmp.eq.s32.totalorder %s15, 5
    %p149 = por %p147, %p148
    %p150 = scmp.ne.s32.totalorder %s139, %s140
    %p151 = scmp.eq.s32.totalorder %s15, 0
    %p152 = por %p150, %p151
    %p153 = scmp.ne.s32.totalorder %s139, %s140
    %p154 = scmp.eq.s32.totalorder %s16, 5
    %p155 = por %p153, %p154
    %p157 = scmp.ne.s32.totalorder %s140, %s156
    %p158 = scmp.eq.s32.totalorder %s16, 0
    %p159 = por %p157, %p158
    %p160 = scmp.le.s32.totalorder 1, %s10
    %p161 = scmp.lt.s32.totalorder %s10, 7
    %p162 = pnand %p160, %p161
    %p163 = pneg %p162
    // Predicated region
    $region9: #{tpu_custom_call.1} parent=5 // pred_check
      _
    $region10: #{tpu_custom_call.1} parent=5 // pred_check_branch
      %165 = sbr.rel (%p162) target = $region12
    $region11: #{tpu_custom_call.1} parent=5 // pred_region
      %s166 = ssub.s32 %s10, 1
    $region12: #{tpu_custom_call.1} parent=5 // pred_fallthru
      _
    %p167 = scmp.lt.s32.totalorder %s10, 6
    // Predicated region
    $region13: #{tpu_custom_call.1} parent=5 // pred_check
      %p168 = pneg %p167
    $region14: #{tpu_custom_call.1} parent=5 // pred_check_branch
      %170 = sbr.rel (%p168) target = $region16
    $region15: #{tpu_custom_call.1} parent=5 // pred_region
      // Predicated region
      $region17: #{tpu_custom_call.1} parent=15 // pred_check
        %p171 = pneg %p42
      $region18: #{tpu_custom_call.1} parent=15 // pred_check_branch
        %173 = sbr.rel (%p171) target = $region20
      $region19: #{tpu_custom_call.1} parent=15 // pred_region
        %s174 = smul.u32 8, %s17
        %p175 = scmp.lt.s32.totalorder %s174, 15
        %s176 = scalar_select %p175, %s174, 15
        %s177 = smul.addr %s176, 8
        %s178 = scalar_lea.vmem %s0, %s177
        %s179 = smul.u32 8, %s17
      $region20: #{tpu_custom_call.1} parent=15 // pred_fallthru
        _
      // Predicated region
      $region21: #{tpu_custom_call.1} parent=15 // pred_check
        %p180 = pneg %p68
      $region22: #{tpu_custom_call.1} parent=15 // pred_check_branch
        %182 = sbr.rel (%p180) target = $region24
      $region23: #{tpu_custom_call.1} parent=15 // pred_region
        %p183 = scmp.lt.s32.totalorder %s18, 2
        %s184 = scalar_select %p183, %s18, 2
        %s185 = scalar_lea.vmem %s1, %s184
      $region24: #{tpu_custom_call.1} parent=15 // pred_fallthru
        _
      // Predicated region
      $region25: #{tpu_custom_call.1} parent=15 // pred_check
        %p186 = pneg %p94
      $region26: #{tpu_custom_call.1} parent=15 // pred_check_branch
        %188 = sbr.rel (%p186) target = $region28
      $region27: #{tpu_custom_call.1} parent=15 // pred_region
        %p189 = scmp.lt.s32.totalorder %s18, 2
        %s190 = scalar_select %p189, %s18, 2
        %s191 = scalar_lea.vmem %s2, %s190
      $region28: #{tpu_custom_call.1} parent=15 // pred_fallthru
        _
      // Predicated region
      $region29: #{tpu_custom_call.1} parent=15 // pred_check
        %p192 = pneg %p120
      $region30: #{tpu_custom_call.1} parent=15 // pred_check_branch
        %194 = sbr.rel (%p192) target = $region32
      $region31: #{tpu_custom_call.1} parent=15 // pred_region
        %p195 = scmp.lt.s32.totalorder %s18, 2
        %s196 = scalar_select %p195, %s18, 2
        %s197 = scalar_lea.vmem %s3, %s196
      $region32: #{tpu_custom_call.1} parent=15 // pred_fallthru
        _
    $region16: #{tpu_custom_call.1} parent=5 // pred_fallthru
      _
    %p198 = scmp.le.s32.totalorder 1, %s10
    %p199 = scmp.lt.s32.totalorder %s10, 7
    %p200 = pnand %p198, %p199
    %p201 = pneg %p200
    // Predicated region
    $region33: #{tpu_custom_call.1} parent=5 // pred_check
      _
    $region34: #{tpu_custom_call.1} parent=5 // pred_check_branch
      %203 = sbr.rel (%p200) target = $region36
    $region35: #{tpu_custom_call.1} parent=5 // pred_region
      %s204 = ssub.s32 %s10, 1
      %s205 = smul.u32 8, %s19
      %p206 = scmp.lt.s32.totalorder %s205, 15
      %s207 = scalar_select %p206, %s205, 15
      %s208 = smul.addr %s207, 8
      %s209 = scalar_lea.vmem %s0, %s208
      %p210 = pneg %p48
      %p211 = pneg %p45
      %p212 = scmp.lt.s32.totalorder %s20, 2
      %s213 = scalar_select %p212, %s20, 2
      %s214 = scalar_lea.vmem %s1, %s213
      %p215 = pneg %p74
      %p216 = pneg %p71
      %p217 = scmp.lt.s32.totalorder %s20, 2
      %s218 = scalar_select %p217, %s20, 2
      %s219 = scalar_lea.vmem %s2, %s218
      %p220 = pneg %p100
      %p221 = pneg %p97
      %p222 = scmp.lt.s32.totalorder %s20, 2
      %s223 = scalar_select %p222, %s20, 2
      %s224 = scalar_lea.vmem %s3, %s223
      %p225 = pneg %p126
      %p226 = pneg %p123
      %p227 = pneg %p152
      %p228 = pneg %p149
      %s229 = smul.u32 8, %s19
      %p230 = scmp.lt.s32.totalorder %s229, 15
      %s231 = scalar_select %p230, %s229, 15
      %s232 = smul.addr %s231, 8
      %s233 = scalar_lea.vmem %s4, %s232
      %s234 = smul.u32 8, %s19
      %p235 = scmp.lt.s32.totalorder %s234, 15
      %s236 = scalar_select %p235, %s234, 15
      %s237 = smul.addr %s236, 8
      %s238 = scalar_lea.vmem %s0, %s237
      %s239 = smul.u32 8, %s19
      %p240 = scmp.lt.s32.totalorder %s20, 2
      %s241 = scalar_select %p240, %s20, 2
      %s242 = scalar_lea.vmem %s1, %s241
      %p243 = scmp.lt.s32.totalorder %s20, 2
      %s244 = scalar_select %p243, %s20, 2
      %s245 = scalar_lea.vmem %s2, %s244
      %p246 = scmp.lt.s32.totalorder %s20, 2
      %s247 = scalar_select %p246, %s20, 2
      %s248 = scalar_lea.vmem %s3, %s247
      %s249 = smul.u32 8, %s19
      %p250 = scmp.lt.s32.totalorder %s249, 15
      %s251 = scalar_select %p250, %s249, 15
      %s252 = smul.addr %s251, 8
      %s253 = scalar_lea.vmem %s4, %s252
      %s254 = smul.u32 8, %s19
      %p255 = scmp.eq.s32.totalorder %s20, 0
      // Predicated region
      $region37: #{tpu_custom_call.1} parent=35 // pred_check
        %p256 = pneg %p255
      $region38: #{tpu_custom_call.1} parent=35 // pred_check_branch
        %258 = sbr.rel (%p256) target = $region40
      $region39: #{tpu_custom_call.1} parent=35 // pred_region
        %vm259 = vcmask 7168
        %260 = vst.msk [vmem:[#allocation2] sm:$0xff] %vm259, 0.0
        %261 = vst.msk [vmem:[#allocation2 + $0x8] sm:$0xff] %vm259, 0.0
        %262 = vst.msk [vmem:[#allocation2 + $0x10] sm:$0xff] %vm259, 0.0
        %263 = vst.msk [vmem:[#allocation2 + $0x18] sm:$0xff] %vm259, 0.0
        %264 = vst.msk [vmem:[#allocation2 + $0x20] sm:$0xff] %vm259, 0.0
        %265 = vst.msk [vmem:[#allocation2 + $0x28] sm:$0xff] %vm259, 0.0
        %266 = vst.msk [vmem:[#allocation2 + $0x30] sm:$0xff] %vm259, 0.0
        %267 = vst.msk [vmem:[#allocation2 + $0x38] sm:$0xff] %vm259, 0.0
      $region40: #{tpu_custom_call.1} parent=35 // pred_fallthru
        _
      %v268 = vld [vmem:[%s238] sm:$0xff]
      %v269 = vld [vmem:[%s238 + $0x8] sm:$0xff]
      %v270 = vld [vmem:[%s238 + $0x10] sm:$0xff]
      %v271 = vld [vmem:[%s238 + $0x18] sm:$0xff]
      %v272 = vld [vmem:[%s238 + $0x20] sm:$0xff]
      %v273 = vld [vmem:[%s238 + $0x28] sm:$0xff]
      %v274 = vld [vmem:[%s238 + $0x30] sm:$0xff]
      %v275 = vld [vmem:[%s238 + $0x38] sm:$0xff]
      %v276 = vld [vmem:[%s242] sm:$0x1]
      %v277 = vld [vmem:[%s245] sm:$0x1]
      %v278 = vld [vmem:[%s248] sm:$0x1]
      %v279 = vrcp.pop %v278
      %v280 = vmul.f32 %v278, %v279
      %v281 = vsub.f32 1.0, %v280
      %v282 = vmul.f32 %v279, %v281
      %v283 = vadd.f32 %v279, %v282
      %vm284 = vweird.f32 %v278
      %vm285 = vweird.f32 %v279
      %vm286 = vmor %vm284, %vm285
      %v287 = vsel %vm286, %v279, %v283
      %v288 = vand.u32 2147483647, %v278
      %vm289 = vcmp.eq.f32.partialorder %v288, 8.507059e+37
      %v290 = vand.u32 %v278, 2147483648
      %v291 = vor.u32 1.1754944e-38, %v290
      %v292 = vsel %vm289, %v291, %v287
      %v293 = vmul.f32 1.0, %v292
      %v294 = vmul.f32 %v276, %v293
      %v295 = vmul.f32 %v277, %v293
      %v296 = vlog2.pop %v278
      %v297 = vmul.f32 %v296, 0.6931472
      %vm298 = vcmask 1040384
      %v299 = vsel %vm298, %v297, 0.0
      %300 = vadd.xlane.f32.xlu0 %v299
      %v301 = vpop.xlane.xlu0 %300
      %303 = vset.pattern.permute.xlu0 0
      %304 = vperm.xlu0 %303, %v268
      %v305 = vpop.permute.xlu0 %304
      %308 = vset.pattern.permute.xlu0 0
      %309 = vperm.xlu0 %308, %v269
      %v310 = vpop.permute.xlu0 %309
      %313 = vset.pattern.permute.xlu0 0
      %314 = vperm.xlu0 %313, %v270
      %v315 = vpop.permute.xlu0 %314
      %318 = vset.pattern.permute.xlu0 0
      %319 = vperm.xlu0 %318, %v271
      %v320 = vpop.permute.xlu0 %319
      %323 = vset.pattern.permute.xlu0 0
      %324 = vperm.xlu0 %323, %v272
      %v325 = vpop.permute.xlu0 %324
      %328 = vset.pattern.permute.xlu0 0
      %329 = vperm.xlu0 %328, %v273
      %v330 = vpop.permute.xlu0 %329
      %333 = vset.pattern.permute.xlu0 0
      %334 = vperm.xlu0 %333, %v274
      %v335 = vpop.permute.xlu0 %334
      %338 = vset.pattern.permute.xlu0 0
      %339 = vperm.xlu0 %338, %v275
      %v340 = vpop.permute.xlu0 %339
      %v343 = vperm.slane %v294, 0
      %v345 = vmul.f32 %v305, %v343
      %v346 = vmul.f32 %v310, %v343
      %v347 = vmul.f32 %v315, %v343
      %v348 = vmul.f32 %v320, %v343
      %v349 = vmul.f32 %v325, %v343
      %v350 = vmul.f32 %v330, %v343
      %v351 = vmul.f32 %v335, %v343
      %v352 = vmul.f32 %v340, %v343
      %v354 = vperm.slane %v295, 0
      %v356 = vsub.f32 %v345, %v354
      %v357 = vsub.f32 %v346, %v354
      %v358 = vsub.f32 %v347, %v354
      %v359 = vsub.f32 %v348, %v354
      %v360 = vsub.f32 %v349, %v354
      %v361 = vsub.f32 %v350, %v354
      %v362 = vsub.f32 %v351, %v354
      %v363 = vsub.f32 %v352, %v354
      %v364 = vmul.f32 %v356, %v356
      %v365 = vmul.f32 %v357, %v357
      %v366 = vmul.f32 %v358, %v358
      %v367 = vmul.f32 %v359, %v359
      %v368 = vmul.f32 %v360, %v360
      %v369 = vmul.f32 %v361, %v361
      %v370 = vmul.f32 %v362, %v362
      %v371 = vmul.f32 %v363, %v363
      %372 = vadd.xlane.f32.xlu0 %v364
      %v373 = vpop.xlane.xlu0 %372
      %374 = vadd.xlane.f32.xlu0 %v365
      %v375 = vpop.xlane.xlu0 %374
      %376 = vadd.xlane.f32.xlu0 %v366
      %v377 = vpop.xlane.xlu0 %376
      %378 = vadd.xlane.f32.xlu0 %v367
      %v379 = vpop.xlane.xlu0 %378
      %380 = vadd.xlane.f32.xlu0 %v368
      %v381 = vpop.xlane.xlu0 %380
      %382 = vadd.xlane.f32.xlu0 %v369
      %v383 = vpop.xlane.xlu0 %382
      %384 = vadd.xlane.f32.xlu0 %v370
      %v385 = vpop.xlane.xlu0 %384
      %386 = vadd.xlane.f32.xlu0 %v371
      %v387 = vpop.xlane.xlu0 %386
      %v388 = vld [vmem:[#allocation2] sm:$0xff]
      %v389 = vld [vmem:[#allocation2 + $0x8] sm:$0xff]
      %v390 = vld [vmem:[#allocation2 + $0x10] sm:$0xff]
      %v391 = vld [vmem:[#allocation2 + $0x18] sm:$0xff]
      %v392 = vld [vmem:[#allocation2 + $0x20] sm:$0xff]
      %v393 = vld [vmem:[#allocation2 + $0x28] sm:$0xff]
      %v394 = vld [vmem:[#allocation2 + $0x30] sm:$0xff]
      %v395 = vld [vmem:[#allocation2 + $0x38] sm:$0xff]
      %v396 = vmul.f32 %v373, -0.5
      %v397 = vmul.f32 %v375, -0.5
      %v398 = vmul.f32 %v377, -0.5
      %v399 = vmul.f32 %v379, -0.5
      %v400 = vmul.f32 %v381, -0.5
      %v401 = vmul.f32 %v383, -0.5
      %v402 = vmul.f32 %v385, -0.5
      %v403 = vmul.f32 %v387, -0.5
      %v404 = vperm.slane %v301, 0
      %v405 = vsub.f32 %v396, %v404
      %v406 = vsub.f32 %v397, %v404
      %v407 = vsub.f32 %v398, %v404
      %v408 = vsub.f32 %v399, %v404
      %v409 = vsub.f32 %v400, %v404
      %v410 = vsub.f32 %v401, %v404
      %v411 = vsub.f32 %v402, %v404
      %v412 = vsub.f32 %v403, %v404
      %v413 = vadd.f32 %v388, %v405
      %v414 = vadd.f32 %v389, %v406
      %v415 = vadd.f32 %v390, %v407
      %v416 = vadd.f32 %v391, %v408
      %v417 = vadd.f32 %v392, %v409
      %v418 = vadd.f32 %v393, %v410
      %v419 = vadd.f32 %v394, %v411
      %v420 = vadd.f32 %v395, %v412
      %vm421 = vcmask 7168
      %422 = vst.msk [vmem:[#allocation2] sm:$0xff] %vm421, %v413
      %423 = vst.msk [vmem:[#allocation2 + $0x8] sm:$0xff] %vm421, %v414
      %424 = vst.msk [vmem:[#allocation2 + $0x10] sm:$0xff] %vm421, %v415
      %425 = vst.msk [vmem:[#allocation2 + $0x18] sm:$0xff] %vm421, %v416
      %426 = vst.msk [vmem:[#allocation2 + $0x20] sm:$0xff] %vm421, %v417
      %427 = vst.msk [vmem:[#allocation2 + $0x28] sm:$0xff] %vm421, %v418
      %428 = vst.msk [vmem:[#allocation2 + $0x30] sm:$0xff] %vm421, %v419
      %429 = vst.msk [vmem:[#allocation2 + $0x38] sm:$0xff] %vm421, %v420
      %p430 = scmp.eq.s32.totalorder %s20, 2
      // Predicated region
      $region41: #{tpu_custom_call.1} parent=35 // pred_check
        %p431 = pneg %p430
      $region42: #{tpu_custom_call.1} parent=35 // pred_check_branch
        %433 = sbr.rel (%p431) target = $region44
      $region43: #{tpu_custom_call.1} parent=35 // pred_region
        %v434 = vld [vmem:[#allocation2] sm:$0xff]
        %v435 = vld [vmem:[#allocation2 + $0x8] sm:$0xff]
        %v436 = vld [vmem:[#allocation2 + $0x10] sm:$0xff]
        %v437 = vld [vmem:[#allocation2 + $0x18] sm:$0xff]
        %v438 = vld [vmem:[#allocation2 + $0x20] sm:$0xff]
        %v439 = vld [vmem:[#allocation2 + $0x28] sm:$0xff]
        %v440 = vld [vmem:[#allocation2 + $0x30] sm:$0xff]
        %v441 = vld [vmem:[#allocation2 + $0x38] sm:$0xff]
        %v442 = vadd.f32 %v434, -275.68155
        %v443 = vadd.f32 %v435, -275.68155
        %v444 = vadd.f32 %v436, -275.68155
        %v445 = vadd.f32 %v437, -275.68155
        %v446 = vadd.f32 %v438, -275.68155
        %v447 = vadd.f32 %v439, -275.68155
        %v448 = vadd.f32 %v440, -275.68155
        %v449 = vadd.f32 %v441, -275.68155
        %450 = vst.msk [vmem:[%s253] sm:$0xff] %vm421, %v442
        %451 = vst.msk [vmem:[%s253 + $0x8] sm:$0xff] %vm421, %v443
        %452 = vst.msk [vmem:[%s253 + $0x10] sm:$0xff] %vm421, %v444
        %453 = vst.msk [vmem:[%s253 + $0x18] sm:$0xff] %vm421, %v445
        %454 = vst.msk [vmem:[%s253 + $0x20] sm:$0xff] %vm421, %v446
        %455 = vst.msk [vmem:[%s253 + $0x28] sm:$0xff] %vm421, %v447
        %456 = vst.msk [vmem:[%s253 + $0x30] sm:$0xff] %vm421, %v448
        %457 = vst.msk [vmem:[%s253 + $0x38] sm:$0xff] %vm421, %v449
      $region44: #{tpu_custom_call.1} parent=35 // pred_fallthru
        _
      %s458 = smul.u32 8, %s19
      %p459 = scmp.lt.s32.totalorder %s458, 15
      %s460 = scalar_select %p459, %s458, 15
      %s461 = smul.addr %s460, 8
      %s462 = scalar_lea.vmem %s4, %s461
      // Predicated region
      $region45: #{tpu_custom_call.1} parent=35 // pred_check
        %p463 = pneg %p149
      $region46: #{tpu_custom_call.1} parent=35 // pred_check_branch
        %465 = sbr.rel (%p463) target = $region48
      $region47: #{tpu_custom_call.1} parent=35 // pred_region
        %s466 = smul.u32 8, %s19
      $region48: #{tpu_custom_call.1} parent=35 // pred_fallthru
        _
    $region36: #{tpu_custom_call.1} parent=5 // pred_fallthru
      _
    %p467 = scmp.le.s32.totalorder 2, %s10
    // Predicated region
    $region49: #{tpu_custom_call.1} parent=5 // pred_check
      %p468 = pneg %p467
    $region50: #{tpu_custom_call.1} parent=5 // pred_check_branch
      %470 = sbr.rel (%p468) target = $region52
    $region51: #{tpu_custom_call.1} parent=5 // pred_region
      %s471 = ssub.s32 %s10, 2
      // Predicated region
      $region53: #{tpu_custom_call.1} parent=51 // pred_check
        %p472 = pneg %p155
      $region54: #{tpu_custom_call.1} parent=51 // pred_check_branch
        %474 = sbr.rel (%p472) target = $region56
      $region55: #{tpu_custom_call.1} parent=51 // pred_region
        %s475 = smul.u32 8, %s21
        %p476 = scmp.lt.s32.totalorder %s475, 15
        %s477 = scalar_select %p476, %s475, 15
        %s478 = smul.addr %s477, 8
        %s479 = scalar_lea.vmem %s4, %s478
      $region56: #{tpu_custom_call.1} parent=51 // pred_fallthru
        _
    $region52: #{tpu_custom_call.1} parent=5 // pred_fallthru
      _
  $region6: #{tpu_custom_call.1} parent=0 // loop_footer
    %s14 = sadd.s32 1, %s10
  $region7: #{tpu_custom_call.1} parent=0 // loop_footer_branch
    %9 = sbr.rel target = $region3
  $region8: #{tpu_custom_call.1} parent=0 // loop_exit
    _

</llo_original>
